<compile_context>
chip_gen: v7x
topology: tpu7x:2x2x1
jax: 0.10.0
libtpu: 0.0.40
codegen_flags: <defaults>
</compile_context>

<pallas_src>
import jax
import jax.numpy as jnp
from jax.experimental import pallas as pl
from jax.experimental.pallas import tpu as pltpu


def concat_squash_kernel(t_ref, x_ref, c_ref, wx_ref, wc_ref,
                         b_ref, gw_ref, gb_ref, o_ref):
    t = t_ref[0]                                            # scalar from SMEM
    # h1 = [x, ctx] @ layer_w.T + layer_b, without materializing the concat:
    # layer_w is pre-split into W_x = layer_w[:, :dim_in].T and
    # W_c = layer_w[:, dim_in:].T in prepare_concat_squash_params().
    h1 = (jnp.dot(x_ref[...], wx_ref[...], preferred_element_type=jnp.float32)
          + jnp.dot(c_ref[...], wc_ref[...], preferred_element_type=jnp.float32)
          + b_ref[...])
    # t-dependent epilogue is a single (1, dim_out) row per tile; the sigmoid
    # goes to the EUP and is negligible.
    gate = t * gw_ref[...] + gb_ref[...]
    bias = t * gb_ref[...]
    o_ref[...] = (h1 * jax.nn.sigmoid(gate) + bias).astype(o_ref.dtype)


def _pick_tile_rows(B, dim_in, cond_dim, dim_out, bytes_per_elem=4,
                    vmem_budget=12 * 1024 * 1024):
    """Pick the batch row-tile.

    Budgets double-buffered x/ctx/out row tiles *and* the double-buffered
    grid-resident weight/bias rows, and guarantees >=2 grid steps (when B > 8)
    so the "parallel" batch axis can shard across the two v7x TensorCores.
    """
    resident = 2 * (dim_in + cond_dim + 3) * dim_out * bytes_per_elem
    per_row = 2 * (dim_in + cond_dim + dim_out) * bytes_per_elem
    tb = max(vmem_budget - resident, per_row) // max(per_row, 1)
    tb = int(max(8, min(2048, (tb // 8) * 8)))
    if B <= 8:
        return B                                            # single full block
    # Cap so the grid has at least two steps (v7x megacore utilization).
    two_tile_cap = pl.cdiv(pl.cdiv(B, 2), 8) * 8
    return int(min(tb, two_tile_cap))


def prepare_concat_squash_params(layer_w, layer_b, hyper_gate_w, hyper_gate_b,
                                 dim_in):
    """One-time parameter layout prep (call once per parameter set, outside
    the ODE time-stepping loop).  Transposes are real copies, so keeping them
    out of the hot path matters for small batches."""
    wx = layer_w[:, :dim_in].T                              # (dim_in,   dim_out)
    wc = layer_w[:, dim_in:].T                              # (cond_dim, dim_out)
    b_row = layer_b.reshape(1, -1)                          # (1, dim_out)
    gw_row = hyper_gate_w.reshape(1, -1)                    # (dim_out,1)->(1,dim_out)
    gb_row = hyper_gate_b.reshape(1, -1)                    # (1, dim_out)
    return wx, wc, b_row, gw_row, gb_row


def concat_squash_linear_prepared(t, x, context, prepared, *, tile_rows=None):
    """Hot-path entry point: params already in kernel layout."""
    wx, wc, b_row, gw_row, gb_row = prepared
    B, dim_in = x.shape
    _, cond_dim = context.shape
    dim_out = wx.shape[1]

    t_arr = jnp.asarray(t, jnp.float32).reshape(1)

    if tile_rows is None:
        tile_rows = _pick_tile_rows(B, dim_in, cond_dim, dim_out)
    TB = int(tile_rows)
    num_tiles = pl.cdiv(B, TB)
    grid = (num_tiles,)

    # Advisory cost for XLA's scheduler around the custom call.
    cost = pl.CostEstimate(
        flops=2 * B * (dim_in + cond_dim) * dim_out + 5 * B * dim_out,
        transcendentals=num_tiles * dim_out,                 # one sigmoid row / tile
        bytes_accessed=4 * (B * (dim_in + cond_dim + dim_out)
                            + (dim_in + cond_dim + 3) * dim_out + 1),
    )

    return pl.pallas_call(
        concat_squash_kernel,
        out_shape=jax.ShapeDtypeStruct((B, dim_out), x.dtype),
        grid=grid,
        in_specs=[
            pl.BlockSpec(memory_space=pltpu.MemorySpace.SMEM),       # t (scalar)
            pl.BlockSpec((TB, dim_in), lambda i: (i, 0)),            # x row tile
            pl.BlockSpec((TB, cond_dim), lambda i: (i, 0)),          # ctx row tile
            pl.BlockSpec((dim_in, dim_out), lambda i: (0, 0)),       # W_x (resident)
            pl.BlockSpec((cond_dim, dim_out), lambda i: (0, 0)),     # W_c (resident)
            pl.BlockSpec((1, dim_out), lambda i: (0, 0)),            # layer_b row
            pl.BlockSpec((1, dim_out), lambda i: (0, 0)),            # gate_w row
            pl.BlockSpec((1, dim_out), lambda i: (0, 0)),            # gate_b row
        ],
        out_specs=pl.BlockSpec((TB, dim_out), lambda i: (i, 0)),
        compiler_params=pltpu.CompilerParams(
            dimension_semantics=("parallel",)),
        cost_estimate=cost,
    )(t_arr, x, context, wx, wc, b_row, gw_row, gb_row)


def concat_squash_linear(t, x, context, layer_w, layer_b, hyper_bias,
                         hyper_gate_w, hyper_gate_b, *, tile_rows=None):
    """Convenience wrapper matching the PyTorch forward signature.

    For repeated calls with frozen parameters (the usual ODE-solver pattern),
    call prepare_concat_squash_params() once and use
    concat_squash_linear_prepared() directly.
    """
    # hyper_bias is unpacked but never used in the PyTorch forward; parity kept.
    del hyper_bias
    prepared = prepare_concat_squash_params(layer_w, layer_b,
                                            hyper_gate_w, hyper_gate_b,
                                            x.shape[-1])
    return concat_squash_linear_prepared(t, x, context, prepared,
                                         tile_rows=tile_rows)


if __name__ == "__main__":
    # Small shapes consistent with the module; B=16 with the auto-picked tile
    # of 8 rows exercises a 2-step ("parallel") batch grid.
    B, dim_in, cond_dim, dim_out = 16, 16, 16, 32
    input_dim = dim_in + cond_dim                           # 'concat' mode

    key = jax.random.PRNGKey(0)
    k = jax.random.split(key, 8)

    # Deterministic synthetic parameters (shapes from set_param_shapes):
    layer_w      = jax.random.normal(k[0], (dim_out, input_dim), jnp.float32) * 0.1
    layer_b      = jax.random.normal(k[1], (dim_out,),           jnp.float32) * 0.1
    hyper_bias   = jax.random.normal(k[2], (dim_out, 1),         jnp.float32) * 0.1  # unused in fwd
    hyper_gate_w = jax.random.normal(k[3], (dim_out, 1),         jnp.float32) * 0.1
    hyper_gate_b = jax.random.normal(k[4], (dim_out,),           jnp.float32) * 0.1

    # Inputs.
    x       = jax.random.normal(k[5], (B, dim_in),   jnp.float32)
    context = jax.random.normal(k[6], (B, cond_dim), jnp.float32)
    t       = jnp.float32(0.37)

    # Hot-path usage: prep params once, reuse across (t, x, context) calls.
    prepared = prepare_concat_squash_params(layer_w, layer_b,
                                            hyper_gate_w, hyper_gate_b, dim_in)
    out = concat_squash_linear_prepared(t, x, context, prepared)
    out = jax.block_until_ready(out)

    # Also exercise the signature-compatible convenience wrapper once.
    out2 = jax.block_until_ready(
        concat_squash_linear(t, x, context, layer_w, layer_b, hyper_bias,
                             hyper_gate_w, hyper_gate_b))

    # Pure-JAX reference (mirrors the PyTorch forward exactly).
    xc_ref = jnp.concatenate([x, context], axis=-1)
    h1_ref = xc_ref @ layer_w.T + layer_b
    gate_ref = t * hyper_gate_w.reshape(1, -1) + hyper_gate_b
    b_ref = t * hyper_gate_b
    ref = h1_ref * jax.nn.sigmoid(gate_ref) + b_ref

    assert out.shape == (B, dim_out)
    assert jnp.allclose(out, ref, atol=1e-5, rtol=1e-5), "mismatch vs reference"
    assert jnp.allclose(out2, ref, atol=1e-5, rtol=1e-5), "wrapper mismatch"
    print("KERNEL_OK")
</pallas_src>

<mosaic_0001>
module attributes {stable_mosaic.version = 11 : i64} {
  func.func @concat_squash_kernel(%arg0: i32, %arg1: memref<1xf32, #tpu.memory_space<smem>>, %arg2: memref<8x16xf32, #tpu.memory_space<vmem>>, %arg3: memref<8x16xf32, #tpu.memory_space<vmem>>, %arg4: memref<16x32xf32, #tpu.memory_space<vmem>>, %arg5: memref<16x32xf32, #tpu.memory_space<vmem>>, %arg6: memref<1x32xf32, #tpu.memory_space<vmem>>, %arg7: memref<1x32xf32, #tpu.memory_space<vmem>>, %arg8: memref<1x32xf32, #tpu.memory_space<vmem>>, %arg9: memref<8x32xf32, #tpu.memory_space<vmem>>) attributes {dimension_semantics = [#tpu.dimension_semantics<parallel>], iteration_bounds = array<i64: 2>, scalar_prefetch = 0 : i64, scratch_operands = 0 : i64, tpu.core_type = #tpu.core_type<tc>, window_params = [{transform_indices = @transform_0, window_bounds = array<i64: 1>}, {transform_indices = @transform_1, window_bounds = array<i64: 8, 16>}, {transform_indices = @transform_2, window_bounds = array<i64: 8, 16>}, {pipeline_mode = #tpu.pipeline_mode<synchronous>, transform_indices = @transform_3, window_bounds = array<i64: 16, 32>}, {pipeline_mode = #tpu.pipeline_mode<synchronous>, transform_indices = @transform_4, window_bounds = array<i64: 16, 32>}, {pipeline_mode = #tpu.pipeline_mode<synchronous>, transform_indices = @transform_5, window_bounds = array<i64: 1, 32>}, {pipeline_mode = #tpu.pipeline_mode<synchronous>, transform_indices = @transform_6, window_bounds = array<i64: 1, 32>}, {pipeline_mode = #tpu.pipeline_mode<synchronous>, transform_indices = @transform_7, window_bounds = array<i64: 1, 32>}, {transform_indices = @transform_8, window_bounds = array<i64: 8, 32>}]} {
    %c0 = arith.constant 0 : index
    %0 = memref.load %arg1[%c0] : memref<1xf32, #tpu.memory_space<smem>>
    %c0_0 = arith.constant 0 : index
    %c0_1 = arith.constant 0 : index
    %1 = vector.load %arg2[%c0_0, %c0_1] : memref<8x16xf32, #tpu.memory_space<vmem>>, vector<8x16xf32>
    %c0_2 = arith.constant 0 : index
    %c0_3 = arith.constant 0 : index
    %2 = vector.load %arg4[%c0_2, %c0_3] : memref<16x32xf32, #tpu.memory_space<vmem>>, vector<16x32xf32>
    %cst = arith.constant dense<0.000000e+00> : vector<8x32xf32>
    %3 = tpu.matmul %1, %2, %cst {dimension_numbers = #tpu.dot_dimension_numbers<[1], [0], [0], [1], [0, 0, 1, 1], [], []>} : vector<8x16xf32>, vector<16x32xf32>, vector<8x32xf32> -> vector<8x32xf32>
    %c0_4 = arith.constant 0 : index
    %c0_5 = arith.constant 0 : index
    %4 = vector.load %arg3[%c0_4, %c0_5] : memref<8x16xf32, #tpu.memory_space<vmem>>, vector<8x16xf32>
    %c0_6 = arith.constant 0 : index
    %c0_7 = arith.constant 0 : index
    %5 = vector.load %arg5[%c0_6, %c0_7] : memref<16x32xf32, #tpu.memory_space<vmem>>, vector<16x32xf32>
    %cst_8 = arith.constant dense<0.000000e+00> : vector<8x32xf32>
    %6 = tpu.matmul %4, %5, %cst_8 {dimension_numbers = #tpu.dot_dimension_numbers<[1], [0], [0], [1], [0, 0, 1, 1], [], []>} : vector<8x16xf32>, vector<16x32xf32>, vector<8x32xf32> -> vector<8x32xf32>
    %7 = arith.addf %3, %6 : vector<8x32xf32>
    %c0_9 = arith.constant 0 : index
    %c0_10 = arith.constant 0 : index
    %8 = vector.load %arg6[%c0_9, %c0_10] : memref<1x32xf32, #tpu.memory_space<vmem>>, vector<1x32xf32>
    %9 = vector.broadcast %8 : vector<1x32xf32> to vector<8x32xf32>
    %10 = arith.addf %7, %9 : vector<8x32xf32>
    %c0_11 = arith.constant 0 : index
    %c0_12 = arith.constant 0 : index
    %11 = vector.load %arg7[%c0_11, %c0_12] : memref<1x32xf32, #tpu.memory_space<vmem>>, vector<1x32xf32>
    %12 = vector.broadcast %0 : f32 to vector<1x32xf32>
    %13 = arith.mulf %12, %11 : vector<1x32xf32>
    %c0_13 = arith.constant 0 : index
    %c0_14 = arith.constant 0 : index
    %14 = vector.load %arg8[%c0_13, %c0_14] : memref<1x32xf32, #tpu.memory_space<vmem>>, vector<1x32xf32>
    %15 = arith.addf %13, %14 : vector<1x32xf32>
    %c0_15 = arith.constant 0 : index
    %c0_16 = arith.constant 0 : index
    %16 = vector.load %arg8[%c0_15, %c0_16] : memref<1x32xf32, #tpu.memory_space<vmem>>, vector<1x32xf32>
    %17 = vector.broadcast %0 : f32 to vector<1x32xf32>
    %18 = arith.mulf %17, %16 : vector<1x32xf32>
    %19 = arith.negf %15 : vector<1x32xf32>
    %20 = math.exp %19 : vector<1x32xf32>
    %cst_17 = arith.constant 1.000000e+00 : f32
    %21 = vector.broadcast %cst_17 : f32 to vector<1x32xf32>
    %22 = arith.addf %21, %20 : vector<1x32xf32>
    %23 = arith.divf %21, %22 : vector<1x32xf32>
    %24 = vector.broadcast %23 : vector<1x32xf32> to vector<8x32xf32>
    %25 = arith.mulf %10, %24 : vector<8x32xf32>
    %26 = vector.broadcast %18 : vector<1x32xf32> to vector<8x32xf32>
    %27 = arith.addf %25, %26 : vector<8x32xf32>
    %c0_18 = arith.constant 0 : index
    %c0_19 = arith.constant 0 : index
    %28 = vector.load %arg9[%c0_18, %c0_19] : memref<8x32xf32, #tpu.memory_space<vmem>>, vector<8x32xf32>
    tpu.vector_store %arg9[%c0_18, %c0_19], %27 {strides = array<i32>} : memref<8x32xf32, #tpu.memory_space<vmem>>, vector<8x32xf32>,
    return
  }
  func.func @transform_0(%arg0: i32) -> i32 {
    %c0_i32 = arith.constant 0 : i32
    %c0_i32_0 = arith.constant 0 : i32
    return %c0_i32 : i32
  }
  func.func @transform_1(%arg0: i32) -> (i32, i32) {
    %c0_i32 = arith.constant 0 : i32
    %c0_i32_0 = arith.constant 0 : i32
    return %arg0, %c0_i32 : i32, i32
  }
  func.func @transform_2(%arg0: i32) -> (i32, i32) {
    %c0_i32 = arith.constant 0 : i32
    %c0_i32_0 = arith.constant 0 : i32
    return %arg0, %c0_i32 : i32, i32
  }
  func.func @transform_3(%arg0: i32) -> (i32, i32) {
    %c0_i32 = arith.constant 0 : i32
    %c0_i32_0 = arith.constant 0 : i32
    %c0_i32_1 = arith.constant 0 : i32
    return %c0_i32, %c0_i32_0 : i32, i32
  }
  func.func @transform_4(%arg0: i32) -> (i32, i32) {
    %c0_i32 = arith.constant 0 : i32
    %c0_i32_0 = arith.constant 0 : i32
    %c0_i32_1 = arith.constant 0 : i32
    return %c0_i32, %c0_i32_0 : i32, i32
  }
  func.func @transform_5(%arg0: i32) -> (i32, i32) {
    %c0_i32 = arith.constant 0 : i32
    %c0_i32_0 = arith.constant 0 : i32
    %c0_i32_1 = arith.constant 0 : i32
    return %c0_i32, %c0_i32_0 : i32, i32
  }
  func.func @transform_6(%arg0: i32) -> (i32, i32) {
    %c0_i32 = arith.constant 0 : i32
    %c0_i32_0 = arith.constant 0 : i32
    %c0_i32_1 = arith.constant 0 : i32
    return %c0_i32, %c0_i32_0 : i32, i32
  }
  func.func @transform_7(%arg0: i32) -> (i32, i32) {
    %c0_i32 = arith.constant 0 : i32
    %c0_i32_0 = arith.constant 0 : i32
    %c0_i32_1 = arith.constant 0 : i32
    return %c0_i32, %c0_i32_0 : i32, i32
  }
  func.func @transform_8(%arg0: i32) -> (i32, i32) {
    %c0_i32 = arith.constant 0 : i32
    %c0_i32_0 = arith.constant 0 : i32
    return %arg0, %c0_i32 : i32, i32
  }
}

</mosaic_0001>

<llo_original>
// kernel: tpu_custom_call.1
$region0: #{tpu_custom_call.1}
  #allocation0 [shape = 'u32[]', space=smem, size = 0x4, offset = 0x4, fixed_abs, tag = 'smem constant byte address 0x4 - core index']
  #allocation1 [shape = 'u32[144,128]{1,0:T(1,128)}', space=vmem, size = 0x12000, scoped, tag = 'internal scratch']
  #allocation2 [shape = 'f32[1]{0:T(128)S(6)}', space=smem, size = 0x200, scoped, tag = 'scoped memory for tpu_custom_call.1']
  %s0 = inlined_call_operand.<no memory space> [shape: f32[1], index: 0, kind: input, shape index: {}]
  %s1 = inlined_call_operand.hbm [shape: f32[16,16], index: 1, kind: input, shape index: {}]
  %s2 = inlined_call_operand.hbm [shape: f32[16,16], index: 2, kind: input, shape index: {}]
  %s3 = inlined_call_operand.hbm [shape: f32[16,32], index: 3, kind: input, shape index: {}]
  %s4 = inlined_call_operand.hbm [shape: f32[16,32], index: 4, kind: input, shape index: {}]
  %s5 = inlined_call_operand.vmem [shape: f32[1,32], index: 5, kind: input, shape index: {}]
  %s6 = inlined_call_operand.vmem [shape: f32[1,32], index: 6, kind: input, shape index: {}]
  %s7 = inlined_call_operand.vmem [shape: f32[1,32], index: 7, kind: input, shape index: {}]
  %s8 = inlined_call_operand.hbm [shape: f32[16,32], index: 8, kind: output, shape index: {}]
  %s9 = sld [smem:[#allocation0]]
  $region81: #{tpu_custom_call.1} parent=0
    _
  %s11 = ssub.s32 1, %s9
  %s12 = scalar_select 0, %s11, %s9
  %13 = sst [smem:[#allocation2]] %s0
  $region1: #{tpu_custom_call.1} parent=0
    #allocation3 [shape = 'u8[8192]{0}', space=vmem, size = 0x2000, scoped, tag = 'input window, operand 1']
    #allocation4 [shape = 's32[2]{0}', space=sflag, size = 0x8, scoped, tag = 'scoped memory for tpu_custom_call.1']
    #allocation5 [shape = 's32[2]{0}', space=sflag, size = 0x8, scoped, tag = 'scoped memory for tpu_custom_call.1']
    #allocation6 [shape = 'u8[8192]{0}', space=vmem, size = 0x2000, scoped, tag = 'input window, operand 2']
    #allocation7 [shape = 's32[2]{0}', space=sflag, size = 0x8, scoped, tag = 'scoped memory for tpu_custom_call.1']
    #allocation8 [shape = 'u8[8192]{0}', space=vmem, size = 0x2000, scoped, tag = 'input window, operand 3, single buffered']
    #allocation9 [shape = 'u8[8192]{0}', space=vmem, size = 0x2000, scoped, tag = 'input window, operand 4, single buffered']
    #allocation10 [shape = 's32[1]{0}', space=sflag, size = 0x4, scoped, tag = 'scoped memory for tpu_custom_call.1']
    #allocation11 [shape = 'u8[8192]{0}', space=vmem, size = 0x2000, scoped, tag = 'output window, operand 0']
    %14 = vsyncpa [#allocation4], 0
    %s15 = scalar_lea.sflag [#allocation4], 1
    %16 = vsyncpa %s15, 0
    %17 = vsyncpa [#allocation7], 0
    %s18 = scalar_lea.sflag [#allocation7], 1
    %19 = vsyncpa %s18, 0
    %20 = vsyncpa [#allocation10], 0
    %21 = vsyncpa [#allocation5], 0
    %s22 = scalar_lea.sflag [#allocation5], 1
    %23 = vsyncpa %s22, 0
    loop: start=0, step=1, limit=4
    $region2: #{tpu_custom_call.1} parent=1 // loop_pre_header
      _
    $region3: #{tpu_custom_call.1} parent=1 // loop_header
      %s25 = sphi 0, %s29
      %p26 = scmp.ge.s32.totalorder %s25, 4
      %s33 = sphi 0, %s33
      %s35 = sphi 0, %s33
      %s36 = sphi 0, %s35
      %s50 = sphi 0, %s36
      %s56 = sphi 0, %s58
      %s59 = sphi 0, %s56
      %s60 = sphi 0, %s59
      %s76 = sphi 0, %s60
      %s82 = sphi 0, %s84
      %s85 = sphi 0, %s82
      %s86 = sphi 0, %s85
      %s102 = sphi 0, %s86
      %s106 = sphi 0, %s106
      %s108 = sphi 0, %s106
      %s109 = sphi 0, %s108
      %s123 = sphi 0, %s109
      %s127 = sphi 0, %s127
      %s129 = sphi 0, %s127
      %s130 = sphi 0, %s129
      %s144 = sphi 0, %s130
      %s148 = sphi 0, %s148
      %s150 = sphi 0, %s148
      %s151 = sphi 0, %s150
      %s165 = sphi 0, %s151
      %s169 = sphi 0, %s169
      %s171 = sphi 0, %s169
      %s172 = sphi 0, %s171
      %s186 = sphi 0, %s172
      %s190 = sphi 0, %s190
      %s192 = sphi 0, %s190
      %s193 = sphi 0, %s192
      %s207 = sphi 0, %s193
      %s213 = sphi 0, %s215
      %s216 = sphi 0, %s213
      %s217 = sphi 0, %s216
      %s233 = sphi 0, %s217
    $region4: #{tpu_custom_call.1} parent=1 // loop_header_branch
      %28 = sbr.rel (%p26) target = $region8
    $region5: #{tpu_custom_call.1} parent=1 // loop_body
      %s30 = ssub.s32 %s25, 1
      %s31 = ssub.s32 %s25, 2
      %s32 = sadd.s32 %s25, 1
      %s34 = sadd.s32 %s33, 1
      %p37 = scmp.eq.s32.totalorder %s25, 1
      %p38 = scmp.ne.s32.totalorder %s33, %s35
      %p39 = scmp.eq.s32.totalorder %s25, 0
      %p40 = por %p38, %p39
      %p41 = scmp.ne.s32.totalorder %s33, %s35
      %p42 = scmp.eq.s32.totalorder %s30, 1
      %p43 = por %p41, %p42
      %p44 = scmp.ne.s32.totalorder %s35, %s36
      %p45 = scmp.eq.s32.totalorder %s30, 0
      %p46 = por %p44, %p45
      %p47 = scmp.ne.s32.totalorder %s35, %s36
      %p48 = scmp.eq.s32.totalorder %s31, 1
      %p49 = por %p47, %p48
      %p51 = scmp.ne.s32.totalorder %s36, %s50
      %p52 = scmp.eq.s32.totalorder %s31, 0
      %p53 = por %p51, %p52
      %s54 = ssub.s32 %s25, %s32
      %p55 = scmp.eq.s32.totalorder %s54, 0
      %s57 = sadd.s32 %s56, 1
      %s58 = scalar_select %p55, %s56, %s57
      %p61 = pneg %p55
      %p62 = scmp.eq.s32.totalorder %s25, 1
      %p63 = por %p61, %p62
      %p64 = scmp.ne.s32.totalorder %s56, %s59
      %p65 = scmp.eq.s32.totalorder %s25, 0
      %p66 = por %p64, %p65
      %p67 = scmp.ne.s32.totalorder %s56, %s59
      %p68 = scmp.eq.s32.totalorder %s30, 1
      %p69 = por %p67, %p68
      %p70 = scmp.ne.s32.totalorder %s59, %s60
      %p71 = scmp.eq.s32.totalorder %s30, 0
      %p72 = por %p70, %p71
      %p73 = scmp.ne.s32.totalorder %s59, %s60
      %p74 = scmp.eq.s32.totalorder %s31, 1
      %p75 = por %p73, %p74
      %p77 = scmp.ne.s32.totalorder %s60, %s76
      %p78 = scmp.eq.s32.totalorder %s31, 0
      %p79 = por %p77, %p78
      %s80 = ssub.s32 %s25, %s32
      %p81 = scmp.eq.s32.totalorder %s80, 0
      %s83 = sadd.s32 %s82, 1
      %s84 = scalar_select %p81, %s82, %s83
      %p87 = pneg %p81
      %p88 = scmp.eq.s32.totalorder %s25, 1
      %p89 = por %p87, %p88
      %p90 = scmp.ne.s32.totalorder %s82, %s85
      %p91 = scmp.eq.s32.totalorder %s25, 0
      %p92 = por %p90, %p91
      %p93 = scmp.ne.s32.totalorder %s82, %s85
      %p94 = scmp.eq.s32.totalorder %s30, 1
      %p95 = por %p93, %p94
      %p96 = scmp.ne.s32.totalorder %s85, %s86
      %p97 = scmp.eq.s32.totalorder %s30, 0
      %p98 = por %p96, %p97
      %p99 = scmp.ne.s32.totalorder %s85, %s86
      %p100 = scmp.eq.s32.totalorder %s31, 1
      %p101 = por %p99, %p100
      %p103 = scmp.ne.s32.totalorder %s86, %s102
      %p104 = scmp.eq.s32.totalorder %s31, 0
      %p105 = por %p103, %p104
      %s107 = sadd.s32 %s106, 1
      %p110 = scmp.eq.s32.totalorder %s25, 1
      %p111 = scmp.ne.s32.totalorder %s106, %s108
      %p112 = scmp.eq.s32.totalorder %s25, 0
      %p113 = por %p111, %p112
      %p114 = scmp.ne.s32.totalorder %s106, %s108
      %p115 = scmp.eq.s32.totalorder %s30, 1
      %p116 = por %p114, %p115
      %p117 = scmp.ne.s32.totalorder %s108, %s109
      %p118 = scmp.eq.s32.totalorder %s30, 0
      %p119 = por %p117, %p118
      %p120 = scmp.ne.s32.totalorder %s108, %s109
      %p121 = scmp.eq.s32.totalorder %s31, 1
      %p122 = por %p120, %p121
      %p124 = scmp.ne.s32.totalorder %s109, %s123
      %p125 = scmp.eq.s32.totalorder %s31, 0
      %p126 = por %p124, %p125
      %s128 = sadd.s32 %s127, 1
      %p131 = scmp.eq.s32.totalorder %s25, 1
      %p132 = scmp.ne.s32.totalorder %s127, %s129
      %p133 = scmp.eq.s32.totalorder %s25, 0
      %p134 = por %p132, %p133
      %p135 = scmp.ne.s32.totalorder %s127, %s129
      %p136 = scmp.eq.s32.totalorder %s30, 1
      %p137 = por %p135, %p136
      %p138 = scmp.ne.s32.totalorder %s129, %s130
      %p139 = scmp.eq.s32.totalorder %s30, 0
      %p140 = por %p138, %p139
      %p141 = scmp.ne.s32.totalorder %s129, %s130
      %p142 = scmp.eq.s32.totalorder %s31, 1
      %p143 = por %p141, %p142
      %p145 = scmp.ne.s32.totalorder %s130, %s144
      %p146 = scmp.eq.s32.totalorder %s31, 0
      %p147 = por %p145, %p146
      %s149 = sadd.s32 %s148, 1
      %p152 = scmp.eq.s32.totalorder %s25, 1
      %p153 = scmp.ne.s32.totalorder %s148, %s150
      %p154 = scmp.eq.s32.totalorder %s25, 0
      %p155 = por %p153, %p154
      %p156 = scmp.ne.s32.totalorder %s148, %s150
      %p157 = scmp.eq.s32.totalorder %s30, 1
      %p158 = por %p156, %p157
      %p159 = scmp.ne.s32.totalorder %s150, %s151
      %p160 = scmp.eq.s32.totalorder %s30, 0
      %p161 = por %p159, %p160
      %p162 = scmp.ne.s32.totalorder %s150, %s151
      %p163 = scmp.eq.s32.totalorder %s31, 1
      %p164 = por %p162, %p163
      %p166 = scmp.ne.s32.totalorder %s151, %s165
      %p167 = scmp.eq.s32.totalorder %s31, 0
      %p168 = por %p166, %p167
      %s170 = sadd.s32 %s169, 1
      %p173 = scmp.eq.s32.totalorder %s25, 1
      %p174 = scmp.ne.s32.totalorder %s169, %s171
      %p175 = scmp.eq.s32.totalorder %s25, 0
      %p176 = por %p174, %p175
      %p177 = scmp.ne.s32.totalorder %s169, %s171
      %p178 = scmp.eq.s32.totalorder %s30, 1
      %p179 = por %p177, %p178
      %p180 = scmp.ne.s32.totalorder %s171, %s172
      %p181 = scmp.eq.s32.totalorder %s30, 0
      %p182 = por %p180, %p181
      %p183 = scmp.ne.s32.totalorder %s171, %s172
      %p184 = scmp.eq.s32.totalorder %s31, 1
      %p185 = por %p183, %p184
      %p187 = scmp.ne.s32.totalorder %s172, %s186
      %p188 = scmp.eq.s32.totalorder %s31, 0
      %p189 = por %p187, %p188
      %s191 = sadd.s32 %s190, 1
      %p194 = scmp.eq.s32.totalorder %s25, 1
      %p195 = scmp.ne.s32.totalorder %s190, %s192
      %p196 = scmp.eq.s32.totalorder %s25, 0
      %p197 = por %p195, %p196
      %p198 = scmp.ne.s32.totalorder %s190, %s192
      %p199 = scmp.eq.s32.totalorder %s30, 1
      %p200 = por %p198, %p199
      %p201 = scmp.ne.s32.totalorder %s192, %s193
      %p202 = scmp.eq.s32.totalorder %s30, 0
      %p203 = por %p201, %p202
      %p204 = scmp.ne.s32.totalorder %s192, %s193
      %p205 = scmp.eq.s32.totalorder %s31, 1
      %p206 = por %p204, %p205
      %p208 = scmp.ne.s32.totalorder %s193, %s207
      %p209 = scmp.eq.s32.totalorder %s31, 0
      %p210 = por %p208, %p209
      %s211 = ssub.s32 %s25, %s32
      %p212 = scmp.eq.s32.totalorder %s211, 0
      %s214 = sadd.s32 %s213, 1
      %s215 = scalar_select %p212, %s213, %s214
      %p218 = pneg %p212
      %p219 = scmp.eq.s32.totalorder %s25, 1
      %p220 = por %p218, %p219
      %p221 = scmp.ne.s32.totalorder %s213, %s216
      %p222 = scmp.eq.s32.totalorder %s25, 0
      %p223 = por %p221, %p222
      %p224 = scmp.ne.s32.totalorder %s213, %s216
      %p225 = scmp.eq.s32.totalorder %s30, 1
      %p226 = por %p224, %p225
      %p227 = scmp.ne.s32.totalorder %s216, %s217
      %p228 = scmp.eq.s32.totalorder %s30, 0
      %p229 = por %p227, %p228
      %p230 = scmp.ne.s32.totalorder %s216, %s217
      %p231 = scmp.eq.s32.totalorder %s31, 1
      %p232 = por %p230, %p231
      %p234 = scmp.ne.s32.totalorder %s217, %s233
      %p235 = scmp.eq.s32.totalorder %s31, 0
      %p236 = por %p234, %p235
      %p237 = scmp.le.s32.totalorder 1, %s25
      %p238 = scmp.lt.s32.totalorder %s25, 3
      %p239 = pnand %p237, %p238
      %p240 = pneg %p239
      // Predicated region
      $region9: #{tpu_custom_call.1} parent=5 // pred_check
        _
      $region10: #{tpu_custom_call.1} parent=5 // pred_check_branch
        %242 = sbr.rel (%p239) target = $region12
      $region11: #{tpu_custom_call.1} parent=5 // pred_region
        %s243 = ssub.s32 %s25, 1
        // Predicated region
        $region13: #{tpu_custom_call.1} parent=11 // pred_check
          %p244 = pneg %p46
        $region14: #{tpu_custom_call.1} parent=11 // pred_check_branch
          %246 = sbr.rel (%p244) target = $region16
        $region15: #{tpu_custom_call.1} parent=11 // pred_region
          _
        $region16: #{tpu_custom_call.1} parent=11 // pred_fallthru
          _
        // Predicated region
        $region17: #{tpu_custom_call.1} parent=11 // pred_check
          %p247 = pneg %p119
        $region18: #{tpu_custom_call.1} parent=11 // pred_check_branch
          %249 = sbr.rel (%p247) target = $region20
        $region19: #{tpu_custom_call.1} parent=11 // pred_region
          %s251 = ssub.s32 256, 256
          %252 = vsyncadd [#allocation7], %s251
          %s253 = sshll.u32 [#allocation8], 4
          %s254 = int_to_ptr.vmem [resolvable:$true] %s253
          %259 = dma.hbm_to_vmem [thread:$0]  %s3, 256, %s254, [#allocation7], 128, 128, 8
        $region20: #{tpu_custom_call.1} parent=11 // pred_fallthru
          _
        // Predicated region
        $region21: #{tpu_custom_call.1} parent=11 // pred_check
          %p260 = pneg %p140
        $region22: #{tpu_custom_call.1} parent=11 // pred_check_branch
          %262 = sbr.rel (%p260) target = $region24
        $region23: #{tpu_custom_call.1} parent=11 // pred_region
          %s264 = ssub.s32 256, 256
          %265 = vsyncadd [#allocation10], %s264
          %s266 = sshll.u32 [#allocation9], 4
          %s267 = int_to_ptr.vmem [resolvable:$true] %s266
          %272 = dma.hbm_to_vmem [thread:$0]  %s4, 256, %s267, [#allocation10], 128, 128, 8
        $region24: #{tpu_custom_call.1} parent=11 // pred_fallthru
          _
        // Predicated region
        $region25: #{tpu_custom_call.1} parent=11 // pred_check
          %p273 = pneg %p161
        $region26: #{tpu_custom_call.1} parent=11 // pred_check_branch
          %275 = sbr.rel (%p273) target = $region28
        $region27: #{tpu_custom_call.1} parent=11 // pred_region
          _
        $region28: #{tpu_custom_call.1} parent=11 // pred_fallthru
          _
        // Predicated region
        $region29: #{tpu_custom_call.1} parent=11 // pred_check
          %p276 = pneg %p182
        $region30: #{tpu_custom_call.1} parent=11 // pred_check_branch
          %278 = sbr.rel (%p276) target = $region32
        $region31: #{tpu_custom_call.1} parent=11 // pred_region
          _
        $region32: #{tpu_custom_call.1} parent=11 // pred_fallthru
          _
        // Predicated region
        $region33: #{tpu_custom_call.1} parent=11 // pred_check
          %p279 = pneg %p203
        $region34: #{tpu_custom_call.1} parent=11 // pred_check_branch
          %281 = sbr.rel (%p279) target = $region36
        $region35: #{tpu_custom_call.1} parent=11 // pred_region
          _
        $region36: #{tpu_custom_call.1} parent=11 // pred_fallthru
          _
      $region12: #{tpu_custom_call.1} parent=5 // pred_fallthru
        _
      %p282 = scmp.lt.s32.totalorder %s25, 2
      // Predicated region
      $region37: #{tpu_custom_call.1} parent=5 // pred_check
        %p283 = pneg %p282
      $region38: #{tpu_custom_call.1} parent=5 // pred_check_branch
        %285 = sbr.rel (%p283) target = $region40
      $region39: #{tpu_custom_call.1} parent=5 // pred_region
        // Predicated region
        $region41: #{tpu_custom_call.1} parent=39 // pred_check
          %p286 = pneg %p66
        $region42: #{tpu_custom_call.1} parent=39 // pred_check_branch
          %288 = sbr.rel (%p286) target = $region44
        $region43: #{tpu_custom_call.1} parent=39 // pred_region
          %s289 = sand.u32 %s56, 1
          %s290 = scalar_lea.sflag [#allocation4], %s289
          %s291 = sand.u32 %s56, 1
          %s292 = smul.addr %s291, 8
          %s293 = scalar_lea.vmem [#allocation3], %s292
          %s295 = ssub.s32 128, 128
          %296 = vsyncadd %s290, %s295
          %s297 = smul.addr %s25, 128
          %s298 = scalar_lea.hbm %s1, %s297
          %s300 = sshll.u32 %s293, 4
          %s301 = int_to_ptr.vmem [resolvable:$true] %s300
          %303 = dma.hbm_to_vmem [thread:$0]  %s298, 128, %s301, %s290
        $region44: #{tpu_custom_call.1} parent=39 // pred_fallthru
          _
        // Predicated region
        $region45: #{tpu_custom_call.1} parent=39 // pred_check
          %p304 = pneg %p92
        $region46: #{tpu_custom_call.1} parent=39 // pred_check_branch
          %306 = sbr.rel (%p304) target = $region48
        $region47: #{tpu_custom_call.1} parent=39 // pred_region
          %s307 = sand.u32 %s25, 1
          %s308 = scalar_lea.sflag [#allocation7], %s307
          %s309 = sand.u32 %s82, 1
          %s310 = smul.addr %s309, 8
          %s311 = scalar_lea.vmem [#allocation6], %s310
          %s313 = ssub.s32 128, 128
          %314 = vsyncadd %s308, %s313
          %s315 = smul.addr %s25, 128
          %s316 = scalar_lea.hbm %s2, %s315
          %s318 = sshll.u32 %s311, 4
          %s319 = int_to_ptr.vmem [resolvable:$true] %s318
          %321 = dma.hbm_to_vmem [thread:$0]  %s316, 128, %s319, %s308
        $region48: #{tpu_custom_call.1} parent=39 // pred_fallthru
          _
      $region40: #{tpu_custom_call.1} parent=5 // pred_fallthru
        _
      %p322 = scmp.le.s32.totalorder 1, %s25
      %p323 = scmp.lt.s32.totalorder %s25, 3
      %p324 = pnand %p322, %p323
      %p325 = pneg %p324
      // Predicated region
      $region49: #{tpu_custom_call.1} parent=5 // pred_check
        _
      $region50: #{tpu_custom_call.1} parent=5 // pred_check_branch
        %327 = sbr.rel (%p324) target = $region52
      $region51: #{tpu_custom_call.1} parent=5 // pred_region
        %s328 = ssub.s32 %s25, 1
        %s329 = sand.u32 %s59, 1
        %s330 = scalar_lea.sflag [#allocation4], %s329
        %s331 = sand.u32 %s59, 1
        %s332 = smul.addr %s331, 8
        %s333 = scalar_lea.vmem [#allocation3], %s332
        // Predicated region
        $region53: #{tpu_custom_call.1} parent=51 // pred_check
          %p334 = pneg %p72
        $region54: #{tpu_custom_call.1} parent=51 // pred_check_branch
          %336 = sbr.rel (%p334) target = $region56
        $region55: #{tpu_custom_call.1} parent=51 // pred_region
          %337 = dma.done %s330, 128
        $region56: #{tpu_custom_call.1} parent=51 // pred_fallthru
          _
        %s338 = sand.u32 %s30, 1
        %s339 = scalar_lea.sflag [#allocation7], %s338
        %s340 = sand.u32 %s85, 1
        %s341 = smul.addr %s340, 8
        %s342 = scalar_lea.vmem [#allocation6], %s341
        // Predicated region
        $region57: #{tpu_custom_call.1} parent=51 // pred_check
          %p343 = pneg %p98
        $region58: #{tpu_custom_call.1} parent=51 // pred_check_branch
          %345 = sbr.rel (%p343) target = $region60
        $region59: #{tpu_custom_call.1} parent=51 // pred_region
          %346 = dma.done %s339, 128
        $region60: #{tpu_custom_call.1} parent=51 // pred_fallthru
          _
        // Predicated region
        $region61: #{tpu_custom_call.1} parent=51 // pred_check
          %p347 = pneg %p119
        $region62: #{tpu_custom_call.1} parent=51 // pred_check_branch
          %349 = sbr.rel (%p347) target = $region64
        $region63: #{tpu_custom_call.1} parent=51 // pred_region
          %350 = dma.done [#allocation7], 256
        $region64: #{tpu_custom_call.1} parent=51 // pred_fallthru
          _
        // Predicated region
        $region65: #{tpu_custom_call.1} parent=51 // pred_check
          %p351 = pneg %p140
        $region66: #{tpu_custom_call.1} parent=51 // pred_check_branch
          %353 = sbr.rel (%p351) target = $region68
        $region67: #{tpu_custom_call.1} parent=51 // pred_region
          %354 = dma.done [#allocation10], 256
        $region68: #{tpu_custom_call.1} parent=51 // pred_fallthru
          _
        %p355 = pneg %p46
        %p356 = pneg %p43
        %s357 = sand.u32 %s59, 1
        %s358 = scalar_lea.sflag [#allocation4], %s357
        %s359 = sand.u32 %s59, 1
        %s360 = smul.addr %s359, 8
        %s361 = scalar_lea.vmem [#allocation3], %s360
        %p362 = pneg %p72
        %p363 = pneg %p69
        %s364 = sand.u32 %s30, 1
        %s365 = scalar_lea.sflag [#allocation7], %s364
        %s366 = sand.u32 %s85, 1
        %s367 = smul.addr %s366, 8
        %s368 = scalar_lea.vmem [#allocation6], %s367
        %p369 = pneg %p98
        %p370 = pneg %p95
        %p371 = pneg %p119
        %p372 = pneg %p116
        %p373 = pneg %p140
        %p374 = pneg %p137
        %p375 = pneg %p161
        %p376 = pneg %p158
        %p377 = pneg %p182
        %p378 = pneg %p179
        %p379 = pneg %p203
        %p380 = pneg %p200
        %p381 = pneg %p229
        %p382 = pneg %p226
        %s383 = sand.u32 %s216, 1
        %s384 = scalar_lea.sflag [#allocation5], %s383
        %s385 = sand.u32 %s216, 1
        %s386 = smul.addr %s385, 8
        %s387 = scalar_lea.vmem [#allocation11], %s386
        %s388 = sld [smem:[#allocation2]]
        %v389 = vld [vmem:[%s333] sm:$0xff]
        %v390 = vld [vmem:[#allocation8] sm:$0xff]
        %v391 = vld [vmem:[#allocation8 + $0x8] sm:$0xff]
        %v392 = vld [vmem:[%s342] sm:$0xff]
        %v393 = vld [vmem:[#allocation9] sm:$0xff]
        %v394 = vld [vmem:[#allocation9 + $0x8] sm:$0xff]
        %vm395 = vcmask 130048
        %v397 = vsel %vm395, %v392, 0
        %399 = vmatprep.subr.mxu0 0.0
        %400 = vmatpush1.msra.mxu0 %v393
        %401 = vmatprep.subr.mxu0 0.0
        %402 = vmatpush1.msra.mxu0 %v394
        %403 = vmatprep.subr.mxu0 0.0
        %404 = vmatpush1.msra.mxu0 0.0
        %405 = vmatprep.subr.mxu0 0.0
        %406 = vmatpush1.msra.mxu0 0.0
        %407 = vmatprep.subr.mxu0 0.0
        %408 = vmatpush1.msra.mxu0 0.0
        %409 = vmatprep.subr.mxu0 0.0
        %410 = vmatpush1.msra.mxu0 0.0
        %411 = vmatprep.subr.mxu0 0.0
        %412 = vmatpush1.msra.mxu0 0.0
        %413 = vmatprep.subr.mxu0 0.0
        %414 = vmatpush1.msra.mxu0 0.0
        %415 = vmatprep.subr.mxu0 0.0
        %416 = vmatpush1.msra.mxu0 0.0
        %417 = vmatprep.subr.mxu0 0.0
        %418 = vmatpush1.msra.mxu0 0.0
        %419 = vmatprep.subr.mxu0 0.0
        %420 = vmatpush1.msra.mxu0 0.0
        %421 = vmatprep.subr.mxu0 0.0
        %422 = vmatpush1.msra.mxu0 0.0
        %423 = vmatprep.subr.mxu0 0.0
        %424 = vmatpush1.msra.mxu0 0.0
        %425 = vmatprep.subr.mxu0 0.0
        %426 = vmatpush1.msra.mxu0 0.0
        %427 = vmatprep.subr.mxu0 0.0
        %428 = vmatpush1.msra.mxu0 0.0
        %429 = vmatprep.subr.mxu0 0.0
        %430 = vmatpush1.msra.mxu0 0.0
        %431 = vmatprep.subr.mxu0 0.0
        %432 = vmatpush1.msra.mxu0 0.0
        %433 = vmatprep.subr.mxu0 0.0
        %434 = vmatpush1.msra.mxu0 0.0
        %435 = vmatprep.subr.mxu0 0.0
        %436 = vmatpush1.msra.mxu0 0.0
        %437 = vmatprep.subr.mxu0 0.0
        %438 = vmatpush1.msra.mxu0 0.0
        %439 = vmatprep.subr.mxu0 0.0
        %440 = vmatpush1.msra.mxu0 0.0
        %441 = vmatprep.subr.mxu0 0.0
        %442 = vmatpush1.msra.mxu0 0.0
        %443 = vmatprep.subr.mxu0 0.0
        %444 = vmatpush1.msra.mxu0 0.0
        %445 = vmatprep.subr.mxu0 0.0
        %446 = vmatpush1.msra.mxu0 0.0
        %447 = vmatprep.subr.mxu0 0.0
        %448 = vmatpush1.msra.mxu0 0.0
        %449 = vmatprep.subr.mxu0 0.0
        %450 = vmatpush1.msra.mxu0 0.0
        %451 = vmatprep.subr.mxu0 0.0
        %452 = vmatpush1.msra.mxu0 0.0
        %453 = vmatprep.subr.mxu0 0.0
        %454 = vmatpush1.msra.mxu0 0.0
        %455 = vmatprep.subr.mxu0 0.0
        %456 = vmatpush1.msra.mxu0 0.0
        %457 = vmatprep.subr.mxu0 0.0
        %458 = vmatpush1.msra.mxu0 0.0
        %459 = vmatprep.subr.mxu0 0.0
        %460 = vmatpush1.msra.mxu0 0.0
        %461 = vmatprep.subr.mxu0 0.0
        %462 = vmatpush1.msra.mxu0 0.0
        %463 = vmatprep.mubr.f32.mxu0 0.0
        %464 = vmatmul.mubr.f32.gmra.mrb[0].mxu0 %v397
        %v465 = vpop.f32.mrb[0].mxu0
        %v466 = vadd.f32 0.0, %v465
        %v467 = vpop.f32.mrb[0].mxu0
        %468 = vdwg.mxu0
        %v470 = vsel %vm395, %v389, 0
        %472 = vmatprep.subr.mxu0 0.0
        %473 = vmatpush1.msra.mxu0 %v390
        %474 = vmatprep.subr.mxu0 0.0
        %475 = vmatpush1.msra.mxu0 %v391
        %476 = vmatprep.subr.mxu0 0.0
        %477 = vmatpush1.msra.mxu0 0.0
        %478 = vmatprep.subr.mxu0 0.0
        %479 = vmatpush1.msra.mxu0 0.0
        %480 = vmatprep.subr.mxu0 0.0
        %481 = vmatpush1.msra.mxu0 0.0
        %482 = vmatprep.subr.mxu0 0.0
        %483 = vmatpush1.msra.mxu0 0.0
        %484 = vmatprep.subr.mxu0 0.0
        %485 = vmatpush1.msra.mxu0 0.0
        %486 = vmatprep.subr.mxu0 0.0
        %487 = vmatpush1.msra.mxu0 0.0
        %488 = vmatprep.subr.mxu0 0.0
        %489 = vmatpush1.msra.mxu0 0.0
        %490 = vmatprep.subr.mxu0 0.0
        %491 = vmatpush1.msra.mxu0 0.0
        %492 = vmatprep.subr.mxu0 0.0
        %493 = vmatpush1.msra.mxu0 0.0
        %494 = vmatprep.subr.mxu0 0.0
        %495 = vmatpush1.msra.mxu0 0.0
        %496 = vmatprep.subr.mxu0 0.0
        %497 = vmatpush1.msra.mxu0 0.0
        %498 = vmatprep.subr.mxu0 0.0
        %499 = vmatpush1.msra.mxu0 0.0
        %500 = vmatprep.subr.mxu0 0.0
        %501 = vmatpush1.msra.mxu0 0.0
        %502 = vmatprep.subr.mxu0 0.0
        %503 = vmatpush1.msra.mxu0 0.0
        %504 = vmatprep.subr.mxu0 0.0
        %505 = vmatpush1.msra.mxu0 0.0
        %506 = vmatprep.subr.mxu0 0.0
        %507 = vmatpush1.msra.mxu0 0.0
        %508 = vmatprep.subr.mxu0 0.0
        %509 = vmatpush1.msra.mxu0 0.0
        %510 = vmatprep.subr.mxu0 0.0
        %511 = vmatpush1.msra.mxu0 0.0
        %512 = vmatprep.subr.mxu0 0.0
        %513 = vmatpush1.msra.mxu0 0.0
        %514 = vmatprep.subr.mxu0 0.0
        %515 = vmatpush1.msra.mxu0 0.0
        %516 = vmatprep.subr.mxu0 0.0
        %517 = vmatpush1.msra.mxu0 0.0
        %518 = vmatprep.subr.mxu0 0.0
        %519 = vmatpush1.msra.mxu0 0.0
        %520 = vmatprep.subr.mxu0 0.0
        %521 = vmatpush1.msra.mxu0 0.0
        %522 = vmatprep.subr.mxu0 0.0
        %523 = vmatpush1.msra.mxu0 0.0
        %524 = vmatprep.subr.mxu0 0.0
        %525 = vmatpush1.msra.mxu0 0.0
        %526 = vmatprep.subr.mxu0 0.0
        %527 = vmatpush1.msra.mxu0 0.0
        %528 = vmatprep.subr.mxu0 0.0
        %529 = vmatpush1.msra.mxu0 0.0
        %530 = vmatprep.subr.mxu0 0.0
        %531 = vmatpush1.msra.mxu0 0.0
        %532 = vmatprep.subr.mxu0 0.0
        %533 = vmatpush1.msra.mxu0 0.0
        %534 = vmatprep.subr.mxu0 0.0
        %535 = vmatpush1.msra.mxu0 0.0
        %536 = vmatprep.mubr.f32.mxu0 0.0
        %537 = vmatmul.mubr.f32.gmra.mrb[0].mxu0 %v470
        %v538 = vpop.f32.mrb[0].mxu0
        %v539 = vadd.f32 %v466, %v538
        %v540 = vpop.f32.mrb[0].mxu0
        %541 = vdwg.mxu0
        %v542 = vld [vmem:[%s5] sm:$0x1]
        %v544 = vlaneseq
        %v545 = vshrl.u32 %v544, 7
        %v546 = vsub.s32 0, %v545
        %v547 = vrot.slane %v542, %v546
        %v549 = vadd.f32 %v539, %v547
        %v550 = vld [vmem:[%s6] sm:$0x1]
        %v551 = vstv %s388
        %v552 = vmul.f32 %v551, %v550
        %v553 = vld [vmem:[%s7] sm:$0x1]
        %v554 = vadd.f32 %v552, %v553
        %v555 = vmul.f32 %v551, %v553
        %v556 = vxor.u32 %v554, 2147483648
        %v557 = vmul.f32 %v556, 1.442695
        %v558 = vpow.pop %v557
        %v559 = vadd.f32 %v558, 1.0
        %v560 = vrcp.pop %v559
        %v561 = vmul.f32 1.0, %v560
        %v563 = vlaneseq
        %v564 = vshrl.u32 %v563, 7
        %v565 = vsub.s32 0, %v564
        %v566 = vrot.slane %v561, %v565
        %v568 = vmul.f32 %v549, %v566
        %v570 = vlaneseq
        %v571 = vshrl.u32 %v570, 7
        %v572 = vsub.s32 0, %v571
        %v573 = vrot.slane %v555, %v572
        %v575 = vadd.f32 %v568, %v573
        %vm576 = vcmask 261120
        %577 = vst.msk [vmem:[%s387] sm:$0xff] %vm576, %v575
        %s578 = sand.u32 %s216, 1
        %s579 = scalar_lea.sflag [#allocation5], %s578
        %s580 = sand.u32 %s216, 1
        %s581 = smul.addr %s580, 8
        %s582 = scalar_lea.vmem [#allocation11], %s581
        // Predicated region
        $region69: #{tpu_custom_call.1} parent=51 // pred_check
          %p583 = pneg %p226
        $region70: #{tpu_custom_call.1} parent=51 // pred_check_branch
          %585 = sbr.rel (%p583) target = $region72
        $region71: #{tpu_custom_call.1} parent=51 // pred_region
          %s587 = ssub.s32 128, 128
          %588 = vsyncadd %s579, %s587
          %s589 = smul.addr %s30, 128
          %s590 = scalar_lea.hbm %s8, %s589
          %s592 = sshll.u32 %s582, 4
          %s593 = int_to_ptr.vmem [resolvable:$true] %s592
          %595 = dma.vmem_to_hbm [thread:$0]  %s593, 128, %s590, %s579
        $region72: #{tpu_custom_call.1} parent=51 // pred_fallthru
          _
      $region52: #{tpu_custom_call.1} parent=5 // pred_fallthru
        _
      %p596 = scmp.le.s32.totalorder 2, %s25
      // Predicated region
      $region73: #{tpu_custom_call.1} parent=5 // pred_check
        %p597 = pneg %p596
      $region74: #{tpu_custom_call.1} parent=5 // pred_check_branch
        %599 = sbr.rel (%p597) target = $region76
      $region75: #{tpu_custom_call.1} parent=5 // pred_region
        %s600 = ssub.s32 %s25, 2
        // Predicated region
        $region77: #{tpu_custom_call.1} parent=75 // pred_check
          %p601 = pneg %p232
        $region78: #{tpu_custom_call.1} parent=75 // pred_check_branch
          %603 = sbr.rel (%p601) target = $region80
        $region79: #{tpu_custom_call.1} parent=75 // pred_region
          %s604 = sand.u32 %s217, 1
          %s605 = scalar_lea.sflag [#allocation5], %s604
          %s606 = sand.u32 %s217, 1
          %s607 = smul.addr %s606, 8
          %s608 = scalar_lea.vmem [#allocation11], %s607
          %609 = dma.done %s605, 128
        $region80: #{tpu_custom_call.1} parent=75 // pred_fallthru
          _
      $region76: #{tpu_custom_call.1} parent=5 // pred_fallthru
        _
    $region6: #{tpu_custom_call.1} parent=1 // loop_footer
      %s29 = sadd.s32 1, %s25
    $region7: #{tpu_custom_call.1} parent=1 // loop_footer_branch
      %24 = sbr.rel target = $region3
    $region8: #{tpu_custom_call.1} parent=1 // loop_exit
      _
    %610 = vsyncpa [#allocation4], 1
    %s611 = scalar_lea.sflag [#allocation4], 1
    %612 = vsyncpa %s611, 1
    %613 = vsyncpa [#allocation7], 1
    %s614 = scalar_lea.sflag [#allocation7], 1
    %615 = vsyncpa %s614, 1
    %616 = vsyncpa [#allocation10], 1
    %617 = vsyncpa [#allocation5], 1
    %s618 = scalar_lea.sflag [#allocation5], 1
    %619 = vsyncpa %s618, 1

</llo_original>
